<compile_context>
chip_gen: v7x
topology: tpu7x:2x2x1
jax: 0.10.0
libtpu: 0.0.40
codegen_flags: <defaults>
</compile_context>

<pallas_src>
import jax
import jax.numpy as jnp
from jax.experimental import pallas as pl
from jax.experimental.pallas import tpu as pltpu


def _dual_linear_kernel(params_ref, x1_ref, x2_ref, o1_ref, o2_ref):
    # params_ref (SMEM via scalar prefetch, f32[4]) = [w1, b1, w2, b2].
    w1 = params_ref[0]
    b1 = params_ref[1]
    w2 = params_ref[2]
    b2 = params_ref[3]
    # Minimal VPU body: one mul + one add per output; params stay f32 and only
    # the final result is cast to the activation dtype.
    o1_ref[...] = (x1_ref[...] * w1 + b1).astype(o1_ref.dtype)  # out1 = linear1(x1)
    o2_ref[...] = (x2_ref[...] * w2 + b2).astype(o2_ref.dtype)  # out2 = linear2(x2)


def _choose_lane(n, lane_target):
    """Largest 128-multiple divisor of n (<= lane_target), preferring rows >= 8
    so f32 vregs are sublane-full.  Returns None if n has no 128-multiple divisor."""
    fallback = None
    for d in range(lane_target, 0, -128):
        if n % d == 0:
            if fallback is None:
                fallback = d
            if n // d >= 8:
                return d
    return fallback


def simple_multiarg_forward(x1, x2, w1, b1, w2, b2, *,
                            lane_target=1024, max_rows_tile=1024):
    """Equivalent of SimpleMultiArgModel.forward.

    x1, x2 : (..., 1) arrays (any leading shape; PyTorch Linear(1,1) convention)
    w1, w2 : (1, 1) weights,  b1, b2 : (1,) biases
    returns (out1, out2) with the same shapes as (x1, x2).
    """
    assert x1.shape == x2.shape, "x1 and x2 must have the same shape"
    assert x1.dtype == x2.dtype
    assert lane_target % 128 == 0 and max_rows_tile >= 8

    orig_shape = x1.shape
    dtype = x1.dtype
    itemsize = jnp.dtype(dtype).itemsize
    n = int(x1.size)

    # --- lane-dense slab: prefer a zero-copy reshape (no padding) -----------------
    lane_eff = _choose_lane(n, lane_target)
    if lane_eff is not None:
        rows = n // lane_eff
        n_padded = n                               # free reshape view, no copy
    else:
        # Truly ragged n: pad only to the next 128 multiple (<= 127 extra elems).
        lane_eff = 128
        rows = pl.cdiv(n, lane_eff)
        n_padded = rows * lane_eff

    # --- tile selection with VMEM guardrail (4 streams x 2 buffers) ---------------
    vmem_guard = 40 * 1024 * 1024                  # fits v7x's 64 MiB physical VMEM
    max_tile_elems = vmem_guard // (4 * 2 * itemsize)
    cap = max(8, (min(max_rows_tile, max_tile_elems // lane_eff) // 8) * 8)
    if rows <= cap:
        rows_tile = rows                           # full-extent block (no (8,128) issue)
        grid_steps = 1
    else:
        rows_tile = cap                            # multiple of 8; last block may be
        grid_steps = pl.cdiv(rows, rows_tile)      # partial -> Pallas masks it (no pad)

    def to_slab(x):
        xf = x.reshape(-1)
        if n_padded != n:
            xf = jnp.pad(xf, (0, n_padded - n))
        return xf.reshape(rows, lane_eff)

    x1_slab = to_slab(x1)
    x2_slab = to_slab(x2)

    # Scalar parameters, kept in f32 (no downcast), scalar-prefetched into SMEM.
    params = jnp.concatenate([
        jnp.asarray(w1, jnp.float32).reshape(-1),
        jnp.asarray(b1, jnp.float32).reshape(-1),
        jnp.asarray(w2, jnp.float32).reshape(-1),
        jnp.asarray(b2, jnp.float32).reshape(-1),
    ])

    # index_map receives (grid_i, *prefetch_refs).
    tile_spec = pl.BlockSpec((rows_tile, lane_eff), lambda i, params: (i, 0))

    footprint = 4 * 2 * rows_tile * lane_eff * itemsize
    vmem_limit = int(min(48 * 1024 * 1024, max(32 * 1024 * 1024, footprint + 8 * 1024 * 1024)))

    cost = pl.CostEstimate(
        flops=4 * rows * lane_eff,                          # mul+add per elem, 2 outputs
        transcendentals=0,
        bytes_accessed=4 * rows * lane_eff * itemsize,      # 2 inputs + 2 outputs
    )

    out1_slab, out2_slab = pl.pallas_call(
        _dual_linear_kernel,
        out_shape=(
            jax.ShapeDtypeStruct((rows, lane_eff), dtype),
            jax.ShapeDtypeStruct((rows, lane_eff), dtype),
        ),
        grid_spec=pltpu.PrefetchScalarGridSpec(
            num_scalar_prefetch=1,
            grid=(grid_steps,),
            in_specs=[tile_spec, tile_spec],
            out_specs=(tile_spec, tile_spec),
        ),
        compiler_params=pltpu.CompilerParams(
            dimension_semantics=("parallel",),   # shards the row-grid across v7x's 2 TCs
            vmem_limit_bytes=vmem_limit,         # v5e default scope is only 16 MiB
        ),
        cost_estimate=cost,
    )(params, x1_slab, x2_slab)

    def from_slab(o):
        if n_padded != n:
            return o.reshape(-1)[:n].reshape(orig_shape)
        return o.reshape(orig_shape)             # free view, no copy

    return from_slab(out1_slab), from_slab(out2_slab)


if __name__ == "__main__":
    key = jax.random.PRNGKey(0)
    k_x1, k_x2, k_w1, k_b1, k_w2, k_b2 = jax.random.split(key, 6)

    # Small shapes consistent with Linear(1,1): batch=8, seq=128, feature=1.
    B, S = 8, 128
    x1 = jax.random.normal(k_x1, (B, S, 1), dtype=jnp.float32)
    x2 = jax.random.normal(k_x2, (B, S, 1), dtype=jnp.float32)

    # Deterministic parameter init with nn.Linear(1,1) shapes: weight (1,1), bias (1,).
    w1 = jax.random.uniform(k_w1, (1, 1), jnp.float32, -1.0, 1.0)
    b1 = jax.random.uniform(k_b1, (1,),   jnp.float32, -1.0, 1.0)
    w2 = jax.random.uniform(k_w2, (1, 1), jnp.float32, -1.0, 1.0)
    b2 = jax.random.uniform(k_b2, (1,),   jnp.float32, -1.0, 1.0)

    out1, out2 = simple_multiarg_forward(x1, x2, w1, b1, w2, b2)
    jax.block_until_ready((out1, out2))

    # Pure-JAX reference (matches PyTorch: x @ W^T + b).
    ref1 = x1 @ w1.T + b1
    ref2 = x2 @ w2.T + b2
    assert out1.shape == x1.shape and out2.shape == x2.shape
    assert jnp.allclose(out1, ref1, atol=1e-6)
    assert jnp.allclose(out2, ref2, atol=1e-6)

    # Ragged size -> minimal 128-pad fallback path (no rows_tile round-up).
    xo1 = jax.random.normal(k_x1, (3, 1000, 1), dtype=jnp.float32)
    xo2 = jax.random.normal(k_x2, (3, 1000, 1), dtype=jnp.float32)
    o1, o2 = simple_multiarg_forward(xo1, xo2, w1, b1, w2, b2)
    jax.block_until_ready((o1, o2))
    assert jnp.allclose(o1, xo1 @ w1.T + b1, atol=1e-6)
    assert jnp.allclose(o2, xo2 @ w2.T + b2, atol=1e-6)

    # Multi-step pipelined grid with a masked partial last block, zero wrapper copies
    # (n = 2560 = 10 rows x 256 lanes; forced rows_tile = 8 -> grid of 2 steps).
    xm1 = jax.random.normal(k_x1, (20, 128, 1), dtype=jnp.float32)
    xm2 = jax.random.normal(k_x2, (20, 128, 1), dtype=jnp.float32)
    m1, m2 = simple_multiarg_forward(xm1, xm2, w1, b1, w2, b2, max_rows_tile=8)
    jax.block_until_ready((m1, m2))
    assert jnp.allclose(m1, xm1 @ w1.T + b1, atol=1e-6)
    assert jnp.allclose(m2, xm2 @ w2.T + b2, atol=1e-6)

    print("KERNEL_OK")
</pallas_src>

<mosaic_0001>
module attributes {stable_mosaic.version = 11 : i64} {
  func.func @_dual_linear_kernel(%arg0: i32, %arg1: memref<4xf32, #tpu.memory_space<smem>>, %arg2: memref<8x128xf32, #tpu.memory_space<vmem>>, %arg3: memref<8x128xf32, #tpu.memory_space<vmem>>, %arg4: memref<8x128xf32, #tpu.memory_space<vmem>>, %arg5: memref<8x128xf32, #tpu.memory_space<vmem>>) attributes {dimension_semantics = [#tpu.dimension_semantics<parallel>], iteration_bounds = array<i64: 1>, scalar_prefetch = 1 : i64, scratch_operands = 0 : i64, tpu.core_type = #tpu.core_type<tc>, window_params = [{transform_indices = @transform_0, window_bounds = array<i64: 8, 128>}, {transform_indices = @transform_1, window_bounds = array<i64: 8, 128>}, {transform_indices = @transform_2, window_bounds = array<i64: 8, 128>}, {transform_indices = @transform_3, window_bounds = array<i64: 8, 128>}]} {
    %c0 = arith.constant 0 : index
    %0 = memref.load %arg1[%c0] : memref<4xf32, #tpu.memory_space<smem>>
    %c1 = arith.constant 1 : index
    %1 = memref.load %arg1[%c1] : memref<4xf32, #tpu.memory_space<smem>>
    %c2 = arith.constant 2 : index
    %2 = memref.load %arg1[%c2] : memref<4xf32, #tpu.memory_space<smem>>
    %c3 = arith.constant 3 : index
    %3 = memref.load %arg1[%c3] : memref<4xf32, #tpu.memory_space<smem>>
    %c0_0 = arith.constant 0 : index
    %c0_1 = arith.constant 0 : index
    %4 = vector.load %arg2[%c0_0, %c0_1] : memref<8x128xf32, #tpu.memory_space<vmem>>, vector<8x128xf32>
    %5 = vector.broadcast %0 : f32 to vector<8x128xf32>
    %6 = arith.mulf %4, %5 : vector<8x128xf32>
    %7 = vector.broadcast %1 : f32 to vector<8x128xf32>
    %8 = arith.addf %6, %7 : vector<8x128xf32>
    %c0_2 = arith.constant 0 : index
    %c0_3 = arith.constant 0 : index
    %9 = vector.load %arg4[%c0_2, %c0_3] : memref<8x128xf32, #tpu.memory_space<vmem>>, vector<8x128xf32>
    tpu.vector_store %arg4[%c0_2, %c0_3], %8 {strides = array<i32>} : memref<8x128xf32, #tpu.memory_space<vmem>>, vector<8x128xf32>,
    %c0_4 = arith.constant 0 : index
    %c0_5 = arith.constant 0 : index
    %10 = vector.load %arg3[%c0_4, %c0_5] : memref<8x128xf32, #tpu.memory_space<vmem>>, vector<8x128xf32>
    %11 = vector.broadcast %2 : f32 to vector<8x128xf32>
    %12 = arith.mulf %10, %11 : vector<8x128xf32>
    %13 = vector.broadcast %3 : f32 to vector<8x128xf32>
    %14 = arith.addf %12, %13 : vector<8x128xf32>
    %c0_6 = arith.constant 0 : index
    %c0_7 = arith.constant 0 : index
    %15 = vector.load %arg5[%c0_6, %c0_7] : memref<8x128xf32, #tpu.memory_space<vmem>>, vector<8x128xf32>
    tpu.vector_store %arg5[%c0_6, %c0_7], %14 {strides = array<i32>} : memref<8x128xf32, #tpu.memory_space<vmem>>, vector<8x128xf32>,
    return
  }
  func.func @transform_0(%arg0: i32, %arg1: memref<4xf32, #tpu.memory_space<smem>>) -> (i32, i32) {
    %c0_i32 = arith.constant 0 : i32
    %c0_i32_0 = arith.constant 0 : i32
    return %arg0, %c0_i32 : i32, i32
  }
  func.func @transform_1(%arg0: i32, %arg1: memref<4xf32, #tpu.memory_space<smem>>) -> (i32, i32) {
    %c0_i32 = arith.constant 0 : i32
    %c0_i32_0 = arith.constant 0 : i32
    return %arg0, %c0_i32 : i32, i32
  }
  func.func @transform_2(%arg0: i32, %arg1: memref<4xf32, #tpu.memory_space<smem>>) -> (i32, i32) {
    %c0_i32 = arith.constant 0 : i32
    %c0_i32_0 = arith.constant 0 : i32
    return %arg0, %c0_i32 : i32, i32
  }
  func.func @transform_3(%arg0: i32, %arg1: memref<4xf32, #tpu.memory_space<smem>>) -> (i32, i32) {
    %c0_i32 = arith.constant 0 : i32
    %c0_i32_0 = arith.constant 0 : i32
    return %arg0, %c0_i32 : i32, i32
  }
}

</mosaic_0001>

<llo_original>
// kernel: tpu_custom_call.1
$region0: #{tpu_custom_call.1}
  #allocation0 [shape = 'u32[]', space=smem, size = 0x4, offset = 0x4, fixed_abs, tag = 'smem constant byte address 0x4 - core index']
  #allocation1 [shape = 'u32[144,128]{1,0:T(1,128)}', space=vmem, size = 0x12000, scoped, tag = 'internal scratch']
  #allocation2 [shape = 's32[1]{0}', space=sflag, size = 0x4, scoped, tag = 'scoped memory for tpu_custom_call.1']
  #allocation3 [shape = 'u8[512]{0}', space=smem, size = 0x200, scoped, tag = 'prefetched SMEM operand 0']
  %s0 = inlined_call_operand.hbm [shape: f32[4], index: 0, kind: input, shape index: {}]
  %s1 = inlined_call_operand.hbm [shape: f32[8,128], index: 1, kind: input, shape index: {}]
  %s2 = inlined_call_operand.hbm [shape: f32[8,128], index: 2, kind: input, shape index: {}]
  %s3 = inlined_call_operand.hbm [shape: f32[8,128], index: 3, kind: output, shape index: {0}]
  %s4 = inlined_call_operand.hbm [shape: f32[8,128], index: 4, kind: output, shape index: {1}]
  %5 = xla_tuple %s3, %s4
  %s6 = sld [smem:[#allocation0]]
  $region34: #{tpu_custom_call.1} parent=0
    _
  %s8 = ssub.s32 1, %s6
  %s9 = scalar_select 0, %s8, %s6
  %11 = dma.hbm_to_smem %s0, 16, [#allocation3], [#allocation2]
  %12 = dma.done [#allocation2], 16
  %13 = sfence
  $region1: #{tpu_custom_call.1} parent=0
    #allocation4 [shape = 'u8[4096]{0}', space=vmem, size = 0x1000, scoped, tag = 'input window, operand 1, single buffered']
    #allocation5 [shape = 's32[1]{0}', space=sflag, size = 0x4, scoped, tag = 'scoped memory for tpu_custom_call.1']
    #allocation6 [shape = 's32[1]{0}', space=sflag, size = 0x4, scoped, tag = 'scoped memory for tpu_custom_call.1']
    #allocation7 [shape = 'u8[4096]{0}', space=vmem, size = 0x1000, scoped, tag = 'input window, operand 2, single buffered']
    #allocation8 [shape = 's32[1]{0}', space=sflag, size = 0x4, scoped, tag = 'scoped memory for tpu_custom_call.1']
    #allocation9 [shape = 'u8[4096]{0}', space=vmem, size = 0x1000, scoped, tag = 'output window, operand 0, single buffered']
    #allocation10 [shape = 'u8[4096]{0}', space=vmem, size = 0x1000, scoped, tag = 'output window, operand 1, single buffered']
    #allocation11 [shape = 's32[1]{0}', space=sflag, size = 0x4, scoped, tag = 'scoped memory for tpu_custom_call.1']
    %14 = vsyncpa [#allocation5], 0
    %15 = vsyncpa [#allocation8], 0
    %16 = vsyncpa [#allocation6], 0
    %17 = vsyncpa [#allocation11], 0
    // Predicated region
    $region2: #{tpu_custom_call.1} parent=1 // pred_check
      _
    $region3: #{tpu_custom_call.1} parent=1 // pred_check_branch
      %19 = sbr.rel (0) target = $region5
    $region4: #{tpu_custom_call.1} parent=1 // pred_region
      %s21 = ssub.s32 128, 128
      %22 = vsyncadd [#allocation5], %s21
      %s24 = sshll.u32 [#allocation4], 4
      %s25 = int_to_ptr.vmem [resolvable:$true] %s24
      %27 = dma.hbm_to_vmem [thread:$0]  %s1, 128, %s25, [#allocation5]
    $region5: #{tpu_custom_call.1} parent=1 // pred_fallthru
      _
    // Predicated region
    $region6: #{tpu_custom_call.1} parent=1 // pred_check
      _
    $region7: #{tpu_custom_call.1} parent=1 // pred_check_branch
      %29 = sbr.rel (0) target = $region9
    $region8: #{tpu_custom_call.1} parent=1 // pred_region
      %s31 = ssub.s32 128, 128
      %32 = vsyncadd [#allocation8], %s31
      %s34 = sshll.u32 [#allocation7], 4
      %s35 = int_to_ptr.vmem [resolvable:$true] %s34
      %37 = dma.hbm_to_vmem [thread:$0]  %s2, 128, %s35, [#allocation8]
    $region9: #{tpu_custom_call.1} parent=1 // pred_fallthru
      _
    // Predicated region
    $region10: #{tpu_custom_call.1} parent=1 // pred_check
      _
    $region11: #{tpu_custom_call.1} parent=1 // pred_check_branch
      %39 = sbr.rel (0) target = $region13
    $region12: #{tpu_custom_call.1} parent=1 // pred_region
      %40 = dma.done [#allocation5], 128
    $region13: #{tpu_custom_call.1} parent=1 // pred_fallthru
      _
    // Predicated region
    $region14: #{tpu_custom_call.1} parent=1 // pred_check
      _
    $region15: #{tpu_custom_call.1} parent=1 // pred_check_branch
      %42 = sbr.rel (0) target = $region17
    $region16: #{tpu_custom_call.1} parent=1 // pred_region
      %43 = dma.done [#allocation8], 128
    $region17: #{tpu_custom_call.1} parent=1 // pred_fallthru
      _
    %s44 = sld [smem:[#allocation3]]
    %s45 = sld [smem:[#allocation3 + $0x1]]
    %s46 = sld [smem:[#allocation3 + $0x2]]
    %s47 = sld [smem:[#allocation3 + $0x3]]
    %v48 = vld [vmem:[#allocation4] sm:$0xff]
    %v49 = vstv %s44
    %v50 = vmul.f32 %v48, %v49
    %v51 = vstv %s45
    %v52 = vadd.f32 %v50, %v51
    %53 = vst [vmem:[#allocation9] sm:$0xff] %v52
    %v54 = vld [vmem:[#allocation7] sm:$0xff]
    %v55 = vstv %s46
    %v56 = vmul.f32 %v54, %v55
    %v57 = vstv %s47
    %v58 = vadd.f32 %v56, %v57
    %59 = vst [vmem:[#allocation10] sm:$0xff] %v58
    // Predicated region
    $region18: #{tpu_custom_call.1} parent=1 // pred_check
      _
    $region19: #{tpu_custom_call.1} parent=1 // pred_check_branch
      %61 = sbr.rel (0) target = $region21
    $region20: #{tpu_custom_call.1} parent=1 // pred_region
      %s63 = ssub.s32 128, 128
      %64 = vsyncadd [#allocation6], %s63
      %s66 = sshll.u32 [#allocation9], 4
      %s67 = int_to_ptr.vmem [resolvable:$true] %s66
      %69 = dma.vmem_to_hbm [thread:$0]  %s67, 128, %s3, [#allocation6]
    $region21: #{tpu_custom_call.1} parent=1 // pred_fallthru
      _
    // Predicated region
    $region22: #{tpu_custom_call.1} parent=1 // pred_check
      _
    $region23: #{tpu_custom_call.1} parent=1 // pred_check_branch
      %71 = sbr.rel (0) target = $region25
    $region24: #{tpu_custom_call.1} parent=1 // pred_region
      %s73 = ssub.s32 128, 128
      %74 = vsyncadd [#allocation11], %s73
      %s76 = sshll.u32 [#allocation10], 4
      %s77 = int_to_ptr.vmem [resolvable:$true] %s76
      %79 = dma.vmem_to_hbm [thread:$0]  %s77, 128, %s4, [#allocation11]
    $region25: #{tpu_custom_call.1} parent=1 // pred_fallthru
      _
    // Predicated region
    $region26: #{tpu_custom_call.1} parent=1 // pred_check
      _
    $region27: #{tpu_custom_call.1} parent=1 // pred_check_branch
      %81 = sbr.rel (0) target = $region29
    $region28: #{tpu_custom_call.1} parent=1 // pred_region
      %82 = dma.done [#allocation6], 128
    $region29: #{tpu_custom_call.1} parent=1 // pred_fallthru
      _
    // Predicated region
    $region30: #{tpu_custom_call.1} parent=1 // pred_check
      _
    $region31: #{tpu_custom_call.1} parent=1 // pred_check_branch
      %84 = sbr.rel (0) target = $region33
    $region32: #{tpu_custom_call.1} parent=1 // pred_region
      %85 = dma.done [#allocation11], 128
    $region33: #{tpu_custom_call.1} parent=1 // pred_fallthru
      _
    %86 = vsyncpa [#allocation5], 1
    %87 = vsyncpa [#allocation8], 1
    %88 = vsyncpa [#allocation6], 1
    %89 = vsyncpa [#allocation11], 1

</llo_original>
